<compile_context>
chip_gen: v7x
topology: tpu7x:2x2x1
jax: 0.10.0
libtpu: 0.0.40
codegen_flags: <defaults>
</compile_context>

<pallas_src>
import functools

import jax
import jax.numpy as jnp
from jax.experimental import pallas as pl
from jax.experimental.pallas import tpu as pltpu

EPS = 1e-5
LANE = 128


def _round_up(n, m):
    return (n + m - 1) // m * m


# --------------------------------------------------------------------------
# Kernel
# --------------------------------------------------------------------------
def multi_network_kernel(x_ref, w1_ref, b1_ref, gamma_ref, beta_ref,
                         w2_ref, b2_ref, mmean_ref, mvar_ref,
                         out_ref, new_mmean_ref, new_mvar_ref,
                         *, momentum):
    # ---- layer1: x @ W1 (bias deliberately skipped: a per-feature constant
    # bias is cancelled exactly by the batch-mean subtraction below) ----
    h = jnp.dot(x_ref[...], w1_ref[...],
                preferred_element_type=jnp.float32)          # [B, HID_P]

    # ---- batch_norm_1d (training mode): biased batch stats over dim 0.
    # Two-pass (centered) variance for numerical robustness.
    b = h.shape[0]
    inv_b = 1.0 / b
    x_mean = jnp.sum(h, axis=0, keepdims=True) * inv_b       # [1, HID_P]
    d = h - x_mean                                           # centered activations
    x_var = jnp.sum(d * d, axis=0, keepdims=True) * inv_b    # biased variance

    inv_std = jax.lax.rsqrt(x_var + EPS)
    scale = gamma_ref[...] * inv_std                         # [1, HID_P]
    # BN + affine + ReLU fused: one FMA + max per element.
    a = jnp.maximum(d * scale + beta_ref[...], 0.0)          # [B, HID_P]

    # ---- layer2: a @ W2 + b2 ----
    out = jnp.dot(a, w2_ref[...], preferred_element_type=jnp.float32)
    out_ref[...] = out + b2_ref[...]

    # ---- running-stat side effect (spec: new = m*old + (1-m)*batch, biased var).
    # b1 shifts the batch mean but not the variance, so it is re-added only here.
    x_mean_full = x_mean + b1_ref[...]
    new_mmean_ref[...] = momentum * mmean_ref[...] + (1.0 - momentum) * x_mean_full
    new_mvar_ref[...] = momentum * mvar_ref[...] + (1.0 - momentum) * x_var


# --------------------------------------------------------------------------
# One-time parameter preparation (do this ONCE, keep results device-resident).
# --------------------------------------------------------------------------
def prepare_multi_network_params(w1, b1, gamma, beta, w2, b2,
                                 moving_mean, moving_var):
    d_in, d_hid = w1.shape
    d_out = w2.shape[1]
    in_p = _round_up(d_in, LANE)      # 784 -> 896
    hid_p = _round_up(d_hid, LANE)    # 100 -> 128
    out_p = _round_up(d_out, LANE)    # 10  -> 128

    def pad_row(v, p):
        v = jnp.asarray(v, jnp.float32).reshape(1, -1)
        return jnp.pad(v, ((0, 0), (0, p - v.shape[1])))

    params = {
        "w1": jnp.pad(jnp.asarray(w1, jnp.float32),
                      ((0, in_p - d_in), (0, hid_p - d_hid))),
        "b1": pad_row(b1, hid_p),
        "gamma": pad_row(gamma, hid_p),
        "beta": pad_row(beta, hid_p),
        "w2": jnp.pad(jnp.asarray(w2, jnp.float32),
                      ((0, hid_p - d_hid), (0, out_p - d_out))),
        "b2": pad_row(b2, out_p),
        "moving_mean": pad_row(moving_mean, hid_p),
        "moving_var": pad_row(moving_var, hid_p),
    }
    # Force the padded copies onto the device now; every subsequent forward
    # call reuses these arrays with zero per-call padding / copy cost.
    params = jax.tree_util.tree_map(lambda a: a.block_until_ready(), params)
    return params


# --------------------------------------------------------------------------
# Per-call forward (jitted).  Only `x` (~28 KB) is padded per call.
# --------------------------------------------------------------------------
@functools.partial(jax.jit, static_argnames=("d_hid", "d_out", "momentum"))
def multi_network_forward(x, params, d_hid, d_out, momentum=0.1):
    B = x.shape[0]
    in_p, hid_p = params["w1"].shape
    out_p = params["w2"].shape[1]

    xp = jnp.pad(x, ((0, 0), (0, in_p - x.shape[1])))

    flops = 2 * B * in_p * hid_p + 2 * B * hid_p * out_p + 10 * B * hid_p
    bytes_accessed = 4 * (xp.size
                          + sum(v.size for v in params.values())
                          + B * out_p + 2 * hid_p)

    out, new_mm, new_mv = pl.pallas_call(
        functools.partial(multi_network_kernel, momentum=momentum),
        out_shape=(
            jax.ShapeDtypeStruct((B, out_p), jnp.float32),
            jax.ShapeDtypeStruct((1, hid_p), jnp.float32),
            jax.ShapeDtypeStruct((1, hid_p), jnp.float32),
        ),
        # No grid: every operand lives in VMEM as a single full-array block.
        in_specs=[pl.BlockSpec(memory_space=pltpu.VMEM)] * 9,
        out_specs=(
            pl.BlockSpec(memory_space=pltpu.VMEM),
            pl.BlockSpec(memory_space=pltpu.VMEM),
            pl.BlockSpec(memory_space=pltpu.VMEM),
        ),
        cost_estimate=pl.CostEstimate(
            flops=flops, transcendentals=hid_p, bytes_accessed=bytes_accessed),
    )(xp, params["w1"], params["b1"], params["gamma"], params["beta"],
      params["w2"], params["b2"], params["moving_mean"], params["moving_var"])

    return out[:, :d_out], new_mm[0, :d_hid], new_mv[0, :d_hid]


# --------------------------------------------------------------------------
# Pure-JAX reference (mirrors the PyTorch module exactly).
# --------------------------------------------------------------------------
def reference_forward(x, w1, b1, gamma, beta, w2, b2,
                      moving_mean, moving_var, momentum=0.1):
    h = x @ w1 + b1
    x_mean = jnp.mean(h, axis=0, keepdims=True)
    x_var = jnp.mean((h - x_mean) ** 2, axis=0, keepdims=True)
    x_hat = (h - x_mean) / jnp.sqrt(x_var + EPS)
    h = gamma * x_hat + beta
    h = jnp.maximum(h, 0.0)
    out = h @ w2 + b2
    new_mm = momentum * moving_mean + (1.0 - momentum) * x_mean[0]
    new_mv = momentum * moving_var + (1.0 - momentum) * x_var[0]
    return out, new_mm, new_mv


if __name__ == "__main__":
    key = jax.random.PRNGKey(0)
    k_x, k_w1, k_b1, k_g, k_be, k_w2, k_b2 = jax.random.split(key, 7)

    B, D_IN, D_HID, D_OUT = 8, 784, 100, 10

    # Deterministic synthetic parameters (shapes match nn.Linear / nn.Parameter).
    x = jax.random.normal(k_x, (B, D_IN), dtype=jnp.float32)
    bound1 = 1.0 / jnp.sqrt(jnp.float32(D_IN))
    w1 = jax.random.uniform(k_w1, (D_IN, D_HID), jnp.float32, -bound1, bound1)
    b1 = jax.random.uniform(k_b1, (D_HID,), jnp.float32, -bound1, bound1)
    gamma = jax.random.normal(k_g, (D_HID,), dtype=jnp.float32)
    beta = jax.random.normal(k_be, (D_HID,), dtype=jnp.float32)
    bound2 = 1.0 / jnp.sqrt(jnp.float32(D_HID))
    w2 = jax.random.uniform(k_w2, (D_HID, D_OUT), jnp.float32, -bound2, bound2)
    b2 = jax.random.uniform(k_b2, (D_OUT,), jnp.float32, -bound2, bound2)
    moving_mean = jnp.zeros((D_HID,), jnp.float32)
    moving_var = jnp.zeros((D_HID,), jnp.float32)

    # One-time padding / device placement (NOT in the per-call path).
    params = prepare_multi_network_params(w1, b1, gamma, beta, w2, b2,
                                          moving_mean, moving_var)

    out, new_mm, new_mv = multi_network_forward(x, params,
                                                d_hid=D_HID, d_out=D_OUT)
    out = jax.block_until_ready(out)
    new_mm = jax.block_until_ready(new_mm)
    new_mv = jax.block_until_ready(new_mv)

    ref_out, ref_mm, ref_mv = reference_forward(x, w1, b1, gamma, beta, w2, b2,
                                                moving_mean, moving_var)

    assert out.shape == (B, D_OUT)
    assert new_mm.shape == (D_HID,) and new_mv.shape == (D_HID,)
    assert jnp.allclose(out, ref_out, atol=1e-4, rtol=1e-4), "output mismatch"
    assert jnp.allclose(new_mm, ref_mm, atol=1e-4, rtol=1e-4), "moving_mean mismatch"
    assert jnp.allclose(new_mv, ref_mv, atol=1e-4, rtol=1e-4), "moving_var mismatch"

    print("KERNEL_OK")
</pallas_src>

<mosaic_0001>
module attributes {stable_mosaic.version = 11 : i64} {
  func.func @multi_network_kernel(%arg0: memref<8x896xf32, #tpu.memory_space<vmem>>, %arg1: memref<896x128xf32, #tpu.memory_space<vmem>>, %arg2: memref<1x128xf32, #tpu.memory_space<vmem>>, %arg3: memref<1x128xf32, #tpu.memory_space<vmem>>, %arg4: memref<1x128xf32, #tpu.memory_space<vmem>>, %arg5: memref<128x128xf32, #tpu.memory_space<vmem>>, %arg6: memref<1x128xf32, #tpu.memory_space<vmem>>, %arg7: memref<1x128xf32, #tpu.memory_space<vmem>>, %arg8: memref<1x128xf32, #tpu.memory_space<vmem>>, %arg9: memref<8x128xf32, #tpu.memory_space<vmem>>, %arg10: memref<1x128xf32, #tpu.memory_space<vmem>>, %arg11: memref<1x128xf32, #tpu.memory_space<vmem>>) attributes {dimension_semantics = [], scalar_prefetch = 0 : i64, scratch_operands = 0 : i64, tpu.core_type = #tpu.core_type<tc>} {
    %c0 = arith.constant 0 : index
    %c0_0 = arith.constant 0 : index
    %0 = vector.load %arg0[%c0, %c0_0] : memref<8x896xf32, #tpu.memory_space<vmem>>, vector<8x896xf32>
    %c0_1 = arith.constant 0 : index
    %c0_2 = arith.constant 0 : index
    %1 = vector.load %arg1[%c0_1, %c0_2] : memref<896x128xf32, #tpu.memory_space<vmem>>, vector<896x128xf32>
    %cst = arith.constant dense<0.000000e+00> : vector<8x128xf32>
    %2 = tpu.matmul %0, %1, %cst {dimension_numbers = #tpu.dot_dimension_numbers<[1], [0], [0], [1], [0, 0, 1, 1], [], []>} : vector<8x896xf32>, vector<896x128xf32>, vector<8x128xf32> -> vector<8x128xf32>
    %cst_3 = arith.constant dense<0.000000e+00> : vector<128xf32>
    %3 = vector.multi_reduction <add>, %2, %cst_3 [0] : vector<8x128xf32> to vector<128xf32>
    %4 = vector.shape_cast %3 : vector<128xf32> to vector<1x128xf32>
    %cst_4 = arith.constant 1.250000e-01 : f32
    %5 = vector.broadcast %cst_4 : f32 to vector<1x128xf32>
    %6 = arith.mulf %4, %5 : vector<1x128xf32>
    %7 = vector.broadcast %6 : vector<1x128xf32> to vector<8x128xf32>
    %8 = arith.subf %2, %7 : vector<8x128xf32>
    %9 = arith.mulf %8, %8 : vector<8x128xf32>
    %cst_5 = arith.constant dense<0.000000e+00> : vector<128xf32>
    %10 = vector.multi_reduction <add>, %9, %cst_5 [0] : vector<8x128xf32> to vector<128xf32>
    %11 = vector.shape_cast %10 : vector<128xf32> to vector<1x128xf32>
    %cst_6 = arith.constant 1.250000e-01 : f32
    %12 = vector.broadcast %cst_6 : f32 to vector<1x128xf32>
    %13 = arith.mulf %11, %12 : vector<1x128xf32>
    %cst_7 = arith.constant 9.99999974E-6 : f32
    %14 = vector.broadcast %cst_7 : f32 to vector<1x128xf32>
    %15 = arith.addf %13, %14 : vector<1x128xf32>
    %16 = math.rsqrt %15 : vector<1x128xf32>
    %c0_8 = arith.constant 0 : index
    %c0_9 = arith.constant 0 : index
    %17 = vector.load %arg3[%c0_8, %c0_9] : memref<1x128xf32, #tpu.memory_space<vmem>>, vector<1x128xf32>
    %18 = arith.mulf %17, %16 : vector<1x128xf32>
    %19 = vector.broadcast %18 : vector<1x128xf32> to vector<8x128xf32>
    %20 = arith.mulf %8, %19 : vector<8x128xf32>
    %c0_10 = arith.constant 0 : index
    %c0_11 = arith.constant 0 : index
    %21 = vector.load %arg4[%c0_10, %c0_11] : memref<1x128xf32, #tpu.memory_space<vmem>>, vector<1x128xf32>
    %22 = vector.broadcast %21 : vector<1x128xf32> to vector<8x128xf32>
    %23 = arith.addf %20, %22 : vector<8x128xf32>
    %cst_12 = arith.constant 0.000000e+00 : f32
    %24 = vector.broadcast %cst_12 : f32 to vector<8x128xf32>
    %25 = arith.maximumf %23, %24 : vector<8x128xf32>
    %c0_13 = arith.constant 0 : index
    %c0_14 = arith.constant 0 : index
    %26 = vector.load %arg5[%c0_13, %c0_14] : memref<128x128xf32, #tpu.memory_space<vmem>>, vector<128x128xf32>
    %cst_15 = arith.constant dense<0.000000e+00> : vector<8x128xf32>
    %27 = tpu.matmul %25, %26, %cst_15 {dimension_numbers = #tpu.dot_dimension_numbers<[1], [0], [0], [1], [0, 0, 1, 1], [], []>} : vector<8x128xf32>, vector<128x128xf32>, vector<8x128xf32> -> vector<8x128xf32>
    %c0_16 = arith.constant 0 : index
    %c0_17 = arith.constant 0 : index
    %28 = vector.load %arg6[%c0_16, %c0_17] : memref<1x128xf32, #tpu.memory_space<vmem>>, vector<1x128xf32>
    %29 = vector.broadcast %28 : vector<1x128xf32> to vector<8x128xf32>
    %30 = arith.addf %27, %29 : vector<8x128xf32>
    %c0_18 = arith.constant 0 : index
    %c0_19 = arith.constant 0 : index
    %31 = vector.load %arg9[%c0_18, %c0_19] : memref<8x128xf32, #tpu.memory_space<vmem>>, vector<8x128xf32>
    tpu.vector_store %arg9[%c0_18, %c0_19], %30 {strides = array<i32>} : memref<8x128xf32, #tpu.memory_space<vmem>>, vector<8x128xf32>,
    %c0_20 = arith.constant 0 : index
    %c0_21 = arith.constant 0 : index
    %32 = vector.load %arg2[%c0_20, %c0_21] : memref<1x128xf32, #tpu.memory_space<vmem>>, vector<1x128xf32>
    %33 = arith.addf %6, %32 : vector<1x128xf32>
    %c0_22 = arith.constant 0 : index
    %c0_23 = arith.constant 0 : index
    %34 = vector.load %arg7[%c0_22, %c0_23] : memref<1x128xf32, #tpu.memory_space<vmem>>, vector<1x128xf32>
    %cst_24 = arith.constant 1.000000e-01 : f32
    %35 = vector.broadcast %cst_24 : f32 to vector<1x128xf32>
    %36 = arith.mulf %35, %34 : vector<1x128xf32>
    %cst_25 = arith.constant 0.899999976 : f32
    %37 = vector.broadcast %cst_25 : f32 to vector<1x128xf32>
    %38 = arith.mulf %37, %33 : vector<1x128xf32>
    %39 = arith.addf %36, %38 : vector<1x128xf32>
    %c0_26 = arith.constant 0 : index
    %c0_27 = arith.constant 0 : index
    %40 = vector.load %arg10[%c0_26, %c0_27] : memref<1x128xf32, #tpu.memory_space<vmem>>, vector<1x128xf32>
    tpu.vector_store %arg10[%c0_26, %c0_27], %39 {strides = array<i32>} : memref<1x128xf32, #tpu.memory_space<vmem>>, vector<1x128xf32>,
    %c0_28 = arith.constant 0 : index
    %c0_29 = arith.constant 0 : index
    %41 = vector.load %arg8[%c0_28, %c0_29] : memref<1x128xf32, #tpu.memory_space<vmem>>, vector<1x128xf32>
    %cst_30 = arith.constant 1.000000e-01 : f32
    %42 = vector.broadcast %cst_30 : f32 to vector<1x128xf32>
    %43 = arith.mulf %42, %41 : vector<1x128xf32>
    %cst_31 = arith.constant 0.899999976 : f32
    %44 = vector.broadcast %cst_31 : f32 to vector<1x128xf32>
    %45 = arith.mulf %44, %13 : vector<1x128xf32>
    %46 = arith.addf %43, %45 : vector<1x128xf32>
    %c0_32 = arith.constant 0 : index
    %c0_33 = arith.constant 0 : index
    %47 = vector.load %arg11[%c0_32, %c0_33] : memref<1x128xf32, #tpu.memory_space<vmem>>, vector<1x128xf32>
    tpu.vector_store %arg11[%c0_32, %c0_33], %46 {strides = array<i32>} : memref<1x128xf32, #tpu.memory_space<vmem>>, vector<1x128xf32>,
    return
  }
}

</mosaic_0001>

<llo_original>
// kernel: multi_network_forward.1
$region0: #{multi_network_forward.1}
  #allocation0 [shape = 'u32[]', space=smem, size = 0x4, offset = 0x4, fixed_abs, tag = 'smem constant byte address 0x4 - core index']
  #allocation1 [shape = 'u32[144,128]{1,0:T(1,128)}', space=vmem, size = 0x12000, scoped, tag = 'internal scratch']
  %s0 = inlined_call_operand.vmem [shape: f32[8,896], index: 0, kind: input, shape index: {}]
  %s1 = inlined_call_operand.hbm [shape: f32[896,128], index: 1, kind: input, shape index: {}]
  %s2 = inlined_call_operand.vmem [shape: f32[1,128], index: 2, kind: input, shape index: {}]
  %s3 = inlined_call_operand.vmem [shape: f32[1,128], index: 3, kind: input, shape index: {}]
  %s4 = inlined_call_operand.vmem [shape: f32[1,128], index: 4, kind: input, shape index: {}]
  %s5 = inlined_call_operand.vmem [shape: f32[128,128], index: 5, kind: input, shape index: {}]
  %s6 = inlined_call_operand.vmem [shape: f32[1,128], index: 6, kind: input, shape index: {}]
  %s7 = inlined_call_operand.vmem [shape: f32[1,128], index: 7, kind: input, shape index: {}]
  %s8 = inlined_call_operand.vmem [shape: f32[1,128], index: 8, kind: input, shape index: {}]
  %s9 = inlined_call_operand.hbm [shape: f32[8,128], index: 9, kind: output, shape index: {0}]
  %s10 = inlined_call_operand.vmem [shape: f32[1,128], index: 10, kind: output, shape index: {1}]
  %s11 = inlined_call_operand.vmem [shape: f32[1,128], index: 11, kind: output, shape index: {2}]
  %12 = xla_tuple %s9, %s10, %s11
  %s13 = sld [smem:[#allocation0]]
  $region66: #{multi_network_forward.1} parent=0
    _
  %s15 = ssub.s32 1, %s13
  %s16 = scalar_select 0, %s15, %s13
  $region1: #{multi_network_forward.1} parent=0
    #allocation2 [shape = 'u8[458752]{0}', space=vmem, size = 0x70000, scoped, tag = 'input window, operand 1, single buffered']
    #allocation3 [shape = 's32[1]{0}', space=sflag, size = 0x4, scoped, tag = 'scoped memory for multi_network_forward.1']
    #allocation4 [shape = 's32[1]{0}', space=sflag, size = 0x4, scoped, tag = 'scoped memory for multi_network_forward.1']
    #allocation5 [shape = 'u8[4096]{0}', space=vmem, size = 0x1000, scoped, tag = 'output window, operand 0, single buffered']
    %17 = vsyncpa [#allocation3], 0
    %18 = vsyncpa [#allocation4], 0
    // Predicated region
    $region2: #{multi_network_forward.1} parent=1 // pred_check
      _
    $region3: #{multi_network_forward.1} parent=1 // pred_check_branch
      %20 = sbr.rel (0) target = $region5
    $region4: #{multi_network_forward.1} parent=1 // pred_region
      _
    $region5: #{multi_network_forward.1} parent=1 // pred_fallthru
      _
    // Predicated region
    $region6: #{multi_network_forward.1} parent=1 // pred_check
      _
    $region7: #{multi_network_forward.1} parent=1 // pred_check_branch
      %22 = sbr.rel (0) target = $region9
    $region8: #{multi_network_forward.1} parent=1 // pred_region
      %s24 = ssub.s32 14336, 14336
      %25 = vsyncadd [#allocation3], %s24
      %s26 = sshll.u32 [#allocation2], 4
      %s27 = int_to_ptr.vmem [resolvable:$true] %s26
      %32 = dma.hbm_to_vmem [thread:$0]  %s1, 14336, %s27, [#allocation3], 128, 128, 8
    $region9: #{multi_network_forward.1} parent=1 // pred_fallthru
      _
    // Predicated region
    $region10: #{multi_network_forward.1} parent=1 // pred_check
      _
    $region11: #{multi_network_forward.1} parent=1 // pred_check_branch
      %34 = sbr.rel (0) target = $region13
    $region12: #{multi_network_forward.1} parent=1 // pred_region
      _
    $region13: #{multi_network_forward.1} parent=1 // pred_fallthru
      _
    // Predicated region
    $region14: #{multi_network_forward.1} parent=1 // pred_check
      _
    $region15: #{multi_network_forward.1} parent=1 // pred_check_branch
      %36 = sbr.rel (0) target = $region17
    $region16: #{multi_network_forward.1} parent=1 // pred_region
      _
    $region17: #{multi_network_forward.1} parent=1 // pred_fallthru
      _
    // Predicated region
    $region18: #{multi_network_forward.1} parent=1 // pred_check
      _
    $region19: #{multi_network_forward.1} parent=1 // pred_check_branch
      %38 = sbr.rel (0) target = $region21
    $region20: #{multi_network_forward.1} parent=1 // pred_region
      _
    $region21: #{multi_network_forward.1} parent=1 // pred_fallthru
      _
    // Predicated region
    $region22: #{multi_network_forward.1} parent=1 // pred_check
      _
    $region23: #{multi_network_forward.1} parent=1 // pred_check_branch
      %40 = sbr.rel (0) target = $region25
    $region24: #{multi_network_forward.1} parent=1 // pred_region
      _
    $region25: #{multi_network_forward.1} parent=1 // pred_fallthru
      _
    // Predicated region
    $region26: #{multi_network_forward.1} parent=1 // pred_check
      _
    $region27: #{multi_network_forward.1} parent=1 // pred_check_branch
      %42 = sbr.rel (0) target = $region29
    $region28: #{multi_network_forward.1} parent=1 // pred_region
      _
    $region29: #{multi_network_forward.1} parent=1 // pred_fallthru
      _
    // Predicated region
    $region30: #{multi_network_forward.1} parent=1 // pred_check
      _
    $region31: #{multi_network_forward.1} parent=1 // pred_check_branch
      %44 = sbr.rel (0) target = $region33
    $region32: #{multi_network_forward.1} parent=1 // pred_region
      _
    $region33: #{multi_network_forward.1} parent=1 // pred_fallthru
      _
    // Predicated region
    $region34: #{multi_network_forward.1} parent=1 // pred_check
      _
    $region35: #{multi_network_forward.1} parent=1 // pred_check_branch
      %46 = sbr.rel (0) target = $region37
    $region36: #{multi_network_forward.1} parent=1 // pred_region
      _
    $region37: #{multi_network_forward.1} parent=1 // pred_fallthru
      _
    // Predicated region
    $region38: #{multi_network_forward.1} parent=1 // pred_check
      _
    $region39: #{multi_network_forward.1} parent=1 // pred_check_branch
      %48 = sbr.rel (0) target = $region41
    $region40: #{multi_network_forward.1} parent=1 // pred_region
      %49 = dma.done [#allocation3], 14336
    $region41: #{multi_network_forward.1} parent=1 // pred_fallthru
      _
    %v50 = vld [vmem:[%s0] sm:$0xff]
    %v51 = vld [vmem:[%s0 + $0x8] sm:$0xff]
    %v52 = vld [vmem:[%s0 + $0x10] sm:$0xff]
    %v53 = vld [vmem:[%s0 + $0x18] sm:$0xff]
    %v54 = vld [vmem:[%s0 + $0x20] sm:$0xff]
    %v55 = vld [vmem:[%s0 + $0x28] sm:$0xff]
    %v56 = vld [vmem:[%s0 + $0x30] sm:$0xff]
    %v57 = vld [vmem:[#allocation2] sm:$0xff]
    %v58 = vld [vmem:[#allocation2 + $0x8] sm:$0xff]
    %v59 = vld [vmem:[#allocation2 + $0x10] sm:$0xff]
    %v60 = vld [vmem:[#allocation2 + $0x18] sm:$0xff]
    %v61 = vld [vmem:[#allocation2 + $0x20] sm:$0xff]
    %v62 = vld [vmem:[#allocation2 + $0x28] sm:$0xff]
    %v63 = vld [vmem:[#allocation2 + $0x30] sm:$0xff]
    %v64 = vld [vmem:[#allocation2 + $0x38] sm:$0xff]
    %v65 = vld [vmem:[#allocation2 + $0x40] sm:$0xff]
    %v66 = vld [vmem:[#allocation2 + $0x48] sm:$0xff]
    %v67 = vld [vmem:[#allocation2 + $0x50] sm:$0xff]
    %v68 = vld [vmem:[#allocation2 + $0x58] sm:$0xff]
    %v69 = vld [vmem:[#allocation2 + $0x60] sm:$0xff]
    %v70 = vld [vmem:[#allocation2 + $0x68] sm:$0xff]
    %v71 = vld [vmem:[#allocation2 + $0x70] sm:$0xff]
    %v72 = vld [vmem:[#allocation2 + $0x78] sm:$0xff]
    %v73 = vld [vmem:[#allocation2 + $0x80] sm:$0xff]
    %v74 = vld [vmem:[#allocation2 + $0x88] sm:$0xff]
    %v75 = vld [vmem:[#allocation2 + $0x90] sm:$0xff]
    %v76 = vld [vmem:[#allocation2 + $0x98] sm:$0xff]
    %v77 = vld [vmem:[#allocation2 + $0xa0] sm:$0xff]
    %v78 = vld [vmem:[#allocation2 + $0xa8] sm:$0xff]
    %v79 = vld [vmem:[#allocation2 + $0xb0] sm:$0xff]
    %v80 = vld [vmem:[#allocation2 + $0xb8] sm:$0xff]
    %v81 = vld [vmem:[#allocation2 + $0xc0] sm:$0xff]
    %v82 = vld [vmem:[#allocation2 + $0xc8] sm:$0xff]
    %v83 = vld [vmem:[#allocation2 + $0xd0] sm:$0xff]
    %v84 = vld [vmem:[#allocation2 + $0xd8] sm:$0xff]
    %v85 = vld [vmem:[#allocation2 + $0xe0] sm:$0xff]
    %v86 = vld [vmem:[#allocation2 + $0xe8] sm:$0xff]
    %v87 = vld [vmem:[#allocation2 + $0xf0] sm:$0xff]
    %v88 = vld [vmem:[#allocation2 + $0xf8] sm:$0xff]
    %v89 = vld [vmem:[#allocation2 + $0x100] sm:$0xff]
    %v90 = vld [vmem:[#allocation2 + $0x108] sm:$0xff]
    %v91 = vld [vmem:[#allocation2 + $0x110] sm:$0xff]
    %v92 = vld [vmem:[#allocation2 + $0x118] sm:$0xff]
    %v93 = vld [vmem:[#allocation2 + $0x120] sm:$0xff]
    %v94 = vld [vmem:[#allocation2 + $0x128] sm:$0xff]
    %v95 = vld [vmem:[#allocation2 + $0x130] sm:$0xff]
    %v96 = vld [vmem:[#allocation2 + $0x138] sm:$0xff]
    %v97 = vld [vmem:[#allocation2 + $0x140] sm:$0xff]
    %v98 = vld [vmem:[#allocation2 + $0x148] sm:$0xff]
    %v99 = vld [vmem:[#allocation2 + $0x150] sm:$0xff]
    %v100 = vld [vmem:[#allocation2 + $0x158] sm:$0xff]
    %v101 = vld [vmem:[#allocation2 + $0x160] sm:$0xff]
    %v102 = vld [vmem:[#allocation2 + $0x168] sm:$0xff]
    %v103 = vld [vmem:[#allocation2 + $0x170] sm:$0xff]
    %v104 = vld [vmem:[#allocation2 + $0x178] sm:$0xff]
    %v105 = vld [vmem:[#allocation2 + $0x180] sm:$0xff]
    %v106 = vld [vmem:[#allocation2 + $0x188] sm:$0xff]
    %v107 = vld [vmem:[#allocation2 + $0x190] sm:$0xff]
    %v108 = vld [vmem:[#allocation2 + $0x198] sm:$0xff]
    %v109 = vld [vmem:[#allocation2 + $0x1a0] sm:$0xff]
    %v110 = vld [vmem:[#allocation2 + $0x1a8] sm:$0xff]
    %v111 = vld [vmem:[#allocation2 + $0x1b0] sm:$0xff]
    %v112 = vld [vmem:[#allocation2 + $0x1b8] sm:$0xff]
    %v113 = vld [vmem:[#allocation2 + $0x1c0] sm:$0xff]
    %v114 = vld [vmem:[#allocation2 + $0x1c8] sm:$0xff]
    %v115 = vld [vmem:[#allocation2 + $0x1d0] sm:$0xff]
    %v116 = vld [vmem:[#allocation2 + $0x1d8] sm:$0xff]
    %v117 = vld [vmem:[#allocation2 + $0x1e0] sm:$0xff]
    %v118 = vld [vmem:[#allocation2 + $0x1e8] sm:$0xff]
    %v119 = vld [vmem:[#allocation2 + $0x1f0] sm:$0xff]
    %v120 = vld [vmem:[#allocation2 + $0x1f8] sm:$0xff]
    %v121 = vld [vmem:[#allocation2 + $0x200] sm:$0xff]
    %v122 = vld [vmem:[#allocation2 + $0x208] sm:$0xff]
    %v123 = vld [vmem:[#allocation2 + $0x210] sm:$0xff]
    %v124 = vld [vmem:[#allocation2 + $0x218] sm:$0xff]
    %v125 = vld [vmem:[#allocation2 + $0x220] sm:$0xff]
    %v126 = vld [vmem:[#allocation2 + $0x228] sm:$0xff]
    %v127 = vld [vmem:[#allocation2 + $0x230] sm:$0xff]
    %v128 = vld [vmem:[#allocation2 + $0x238] sm:$0xff]
    %v129 = vld [vmem:[#allocation2 + $0x240] sm:$0xff]
    %v130 = vld [vmem:[#allocation2 + $0x248] sm:$0xff]
    %v131 = vld [vmem:[#allocation2 + $0x250] sm:$0xff]
    %v132 = vld [vmem:[#allocation2 + $0x258] sm:$0xff]
    %v133 = vld [vmem:[#allocation2 + $0x260] sm:$0xff]
    %v134 = vld [vmem:[#allocation2 + $0x268] sm:$0xff]
    %v135 = vld [vmem:[#allocation2 + $0x270] sm:$0xff]
    %v136 = vld [vmem:[#allocation2 + $0x278] sm:$0xff]
    %v137 = vld [vmem:[#allocation2 + $0x280] sm:$0xff]
    %v138 = vld [vmem:[#allocation2 + $0x288] sm:$0xff]
    %v139 = vld [vmem:[#allocation2 + $0x290] sm:$0xff]
    %v140 = vld [vmem:[#allocation2 + $0x298] sm:$0xff]
    %v141 = vld [vmem:[#allocation2 + $0x2a0] sm:$0xff]
    %v142 = vld [vmem:[#allocation2 + $0x2a8] sm:$0xff]
    %v143 = vld [vmem:[#allocation2 + $0x2b0] sm:$0xff]
    %v144 = vld [vmem:[#allocation2 + $0x2b8] sm:$0xff]
    %v145 = vld [vmem:[#allocation2 + $0x2c0] sm:$0xff]
    %v146 = vld [vmem:[#allocation2 + $0x2c8] sm:$0xff]
    %v147 = vld [vmem:[#allocation2 + $0x2d0] sm:$0xff]
    %v148 = vld [vmem:[#allocation2 + $0x2d8] sm:$0xff]
    %v149 = vld [vmem:[#allocation2 + $0x2e0] sm:$0xff]
    %v150 = vld [vmem:[#allocation2 + $0x2e8] sm:$0xff]
    %v151 = vld [vmem:[#allocation2 + $0x2f0] sm:$0xff]
    %v152 = vld [vmem:[#allocation2 + $0x2f8] sm:$0xff]
    %v153 = vld [vmem:[#allocation2 + $0x300] sm:$0xff]
    %v154 = vld [vmem:[#allocation2 + $0x308] sm:$0xff]
    %v155 = vld [vmem:[#allocation2 + $0x310] sm:$0xff]
    %v156 = vld [vmem:[#allocation2 + $0x318] sm:$0xff]
    %v157 = vld [vmem:[#allocation2 + $0x320] sm:$0xff]
    %v158 = vld [vmem:[#allocation2 + $0x328] sm:$0xff]
    %v159 = vld [vmem:[#allocation2 + $0x330] sm:$0xff]
    %v160 = vld [vmem:[#allocation2 + $0x338] sm:$0xff]
    %v161 = vld [vmem:[#allocation2 + $0x340] sm:$0xff]
    %v162 = vld [vmem:[#allocation2 + $0x348] sm:$0xff]
    %v163 = vld [vmem:[#allocation2 + $0x350] sm:$0xff]
    %v164 = vld [vmem:[#allocation2 + $0x358] sm:$0xff]
    %v165 = vld [vmem:[#allocation2 + $0x360] sm:$0xff]
    %v166 = vld [vmem:[#allocation2 + $0x368] sm:$0xff]
    %v167 = vld [vmem:[#allocation2 + $0x370] sm:$0xff]
    %v168 = vld [vmem:[#allocation2 + $0x378] sm:$0xff]
    %169 = vmatprep.subr.mxu0 0.0
    %170 = vmatpush1.msra.mxu0 %v57
    %171 = vmatprep.subr.mxu0 0.0
    %172 = vmatpush1.msra.mxu0 %v58
    %173 = vmatprep.subr.mxu0 0.0
    %174 = vmatpush1.msra.mxu0 %v59
    %175 = vmatprep.subr.mxu0 0.0
    %176 = vmatpush1.msra.mxu0 %v60
    %177 = vmatprep.subr.mxu0 0.0
    %178 = vmatpush1.msra.mxu0 %v61
    %179 = vmatprep.subr.mxu0 0.0
    %180 = vmatpush1.msra.mxu0 %v62
    %181 = vmatprep.subr.mxu0 0.0
    %182 = vmatpush1.msra.mxu0 %v63
    %183 = vmatprep.subr.mxu0 0.0
    %184 = vmatpush1.msra.mxu0 %v64
    %185 = vmatprep.subr.mxu0 0.0
    %186 = vmatpush1.msra.mxu0 %v65
    %187 = vmatprep.subr.mxu0 0.0
    %188 = vmatpush1.msra.mxu0 %v66
    %189 = vmatprep.subr.mxu0 0.0
    %190 = vmatpush1.msra.mxu0 %v67
    %191 = vmatprep.subr.mxu0 0.0
    %192 = vmatpush1.msra.mxu0 %v68
    %193 = vmatprep.subr.mxu0 0.0
    %194 = vmatpush1.msra.mxu0 %v69
    %195 = vmatprep.subr.mxu0 0.0
    %196 = vmatpush1.msra.mxu0 %v70
    %197 = vmatprep.subr.mxu0 0.0
    %198 = vmatpush1.msra.mxu0 %v71
    %199 = vmatprep.subr.mxu0 0.0
    %200 = vmatpush1.msra.mxu0 %v72
    %201 = vmatprep.subr.mxu0 0.0
    %202 = vmatpush1.msra.mxu0 %v73
    %203 = vmatprep.subr.mxu0 0.0
    %204 = vmatpush1.msra.mxu0 %v74
    %205 = vmatprep.subr.mxu0 0.0
    %206 = vmatpush1.msra.mxu0 %v75
    %207 = vmatprep.subr.mxu0 0.0
    %208 = vmatpush1.msra.mxu0 %v76
    %209 = vmatprep.subr.mxu0 0.0
    %210 = vmatpush1.msra.mxu0 %v77
    %211 = vmatprep.subr.mxu0 0.0
    %212 = vmatpush1.msra.mxu0 %v78
    %213 = vmatprep.subr.mxu0 0.0
    %214 = vmatpush1.msra.mxu0 %v79
    %215 = vmatprep.subr.mxu0 0.0
    %216 = vmatpush1.msra.mxu0 %v80
    %217 = vmatprep.subr.mxu0 0.0
    %218 = vmatpush1.msra.mxu0 %v81
    %219 = vmatprep.subr.mxu0 0.0
    %220 = vmatpush1.msra.mxu0 %v82
    %221 = vmatprep.subr.mxu0 0.0
    %222 = vmatpush1.msra.mxu0 %v83
    %223 = vmatprep.subr.mxu0 0.0
    %224 = vmatpush1.msra.mxu0 %v84
    %225 = vmatprep.subr.mxu0 0.0
    %226 = vmatpush1.msra.mxu0 %v85
    %227 = vmatprep.subr.mxu0 0.0
    %228 = vmatpush1.msra.mxu0 %v86
    %229 = vmatprep.subr.mxu0 0.0
    %230 = vmatpush1.msra.mxu0 %v87
    %231 = vmatprep.subr.mxu0 0.0
    %232 = vmatpush1.msra.mxu0 %v88
    %233 = vmatprep.mubr.f32.mxu0 %v51
    %234 = vmatmul.mubr.f32.gmra.mrb[0].mxu0 %v50
    %v235 = vpop.f32.mrb[0].mxu0
    %v236 = vadd.f32 0.0, %v235
    %v237 = vpop.f32.mrb[0].mxu0
    %238 = vdwg.mxu0
    %239 = vmatprep.subr.mxu0 0.0
    %240 = vmatpush1.msra.mxu0 %v89
    %241 = vmatprep.subr.mxu0 0.0
    %242 = vmatpush1.msra.mxu0 %v90
    %243 = vmatprep.subr.mxu0 0.0
    %244 = vmatpush1.msra.mxu0 %v91
    %245 = vmatprep.subr.mxu0 0.0
    %246 = vmatpush1.msra.mxu0 %v92
    %247 = vmatprep.subr.mxu0 0.0
    %248 = vmatpush1.msra.mxu0 %v93
    %249 = vmatprep.subr.mxu0 0.0
    %250 = vmatpush1.msra.mxu0 %v94
    %251 = vmatprep.subr.mxu0 0.0
    %252 = vmatpush1.msra.mxu0 %v95
    %253 = vmatprep.subr.mxu0 0.0
    %254 = vmatpush1.msra.mxu0 %v96
    %255 = vmatprep.subr.mxu0 0.0
    %256 = vmatpush1.msra.mxu0 %v97
    %257 = vmatprep.subr.mxu0 0.0
    %258 = vmatpush1.msra.mxu0 %v98
    %259 = vmatprep.subr.mxu0 0.0
    %260 = vmatpush1.msra.mxu0 %v99
    %261 = vmatprep.subr.mxu0 0.0
    %262 = vmatpush1.msra.mxu0 %v100
    %263 = vmatprep.subr.mxu0 0.0
    %264 = vmatpush1.msra.mxu0 %v101
    %265 = vmatprep.subr.mxu0 0.0
    %266 = vmatpush1.msra.mxu0 %v102
    %267 = vmatprep.subr.mxu0 0.0
    %268 = vmatpush1.msra.mxu0 %v103
    %269 = vmatprep.subr.mxu0 0.0
    %270 = vmatpush1.msra.mxu0 %v104
    %271 = vmatprep.subr.mxu0 0.0
    %272 = vmatpush1.msra.mxu0 %v105
    %273 = vmatprep.subr.mxu0 0.0
    %274 = vmatpush1.msra.mxu0 %v106
    %275 = vmatprep.subr.mxu0 0.0
    %276 = vmatpush1.msra.mxu0 %v107
    %277 = vmatprep.subr.mxu0 0.0
    %278 = vmatpush1.msra.mxu0 %v108
    %279 = vmatprep.subr.mxu0 0.0
    %280 = vmatpush1.msra.mxu0 %v109
    %281 = vmatprep.subr.mxu0 0.0
    %282 = vmatpush1.msra.mxu0 %v110
    %283 = vmatprep.subr.mxu0 0.0
    %284 = vmatpush1.msra.mxu0 %v111
    %285 = vmatprep.subr.mxu0 0.0
    %286 = vmatpush1.msra.mxu0 %v112
    %287 = vmatprep.subr.mxu0 0.0
    %288 = vmatpush1.msra.mxu0 %v113
    %289 = vmatprep.subr.mxu0 0.0
    %290 = vmatpush1.msra.mxu0 %v114
    %291 = vmatprep.subr.mxu0 0.0
    %292 = vmatpush1.msra.mxu0 %v115
    %293 = vmatprep.subr.mxu0 0.0
    %294 = vmatpush1.msra.mxu0 %v116
    %295 = vmatprep.subr.mxu0 0.0
    %296 = vmatpush1.msra.mxu0 %v117
    %297 = vmatprep.subr.mxu0 0.0
    %298 = vmatpush1.msra.mxu0 %v118
    %299 = vmatprep.subr.mxu0 0.0
    %300 = vmatpush1.msra.mxu0 %v119
    %301 = vmatprep.subr.mxu0 0.0
    %302 = vmatpush1.msra.mxu0 %v120
    %303 = vmatprep.mubr.f32.mxu0 %v53
    %304 = vmatmul.mubr.f32.gmra.mrb[0].mxu0 %v52
    %v305 = vpop.f32.mrb[0].mxu0
    %v306 = vadd.f32 %v236, %v305
    %v307 = vpop.f32.mrb[0].mxu0
    %308 = vdwg.mxu0
    %309 = vmatprep.subr.mxu0 0.0
    %310 = vmatpush1.msra.mxu0 %v121
    %311 = vmatprep.subr.mxu0 0.0
    %312 = vmatpush1.msra.mxu0 %v122
    %313 = vmatprep.subr.mxu0 0.0
    %314 = vmatpush1.msra.mxu0 %v123
    %315 = vmatprep.subr.mxu0 0.0
    %316 = vmatpush1.msra.mxu0 %v124
    %317 = vmatprep.subr.mxu0 0.0
    %318 = vmatpush1.msra.mxu0 %v125
    %319 = vmatprep.subr.mxu0 0.0
    %320 = vmatpush1.msra.mxu0 %v126
    %321 = vmatprep.subr.mxu0 0.0
    %322 = vmatpush1.msra.mxu0 %v127
    %323 = vmatprep.subr.mxu0 0.0
    %324 = vmatpush1.msra.mxu0 %v128
    %325 = vmatprep.subr.mxu0 0.0
    %326 = vmatpush1.msra.mxu0 %v129
    %327 = vmatprep.subr.mxu0 0.0
    %328 = vmatpush1.msra.mxu0 %v130
    %329 = vmatprep.subr.mxu0 0.0
    %330 = vmatpush1.msra.mxu0 %v131
    %331 = vmatprep.subr.mxu0 0.0
    %332 = vmatpush1.msra.mxu0 %v132
    %333 = vmatprep.subr.mxu0 0.0
    %334 = vmatpush1.msra.mxu0 %v133
    %335 = vmatprep.subr.mxu0 0.0
    %336 = vmatpush1.msra.mxu0 %v134
    %337 = vmatprep.subr.mxu0 0.0
    %338 = vmatpush1.msra.mxu0 %v135
    %339 = vmatprep.subr.mxu0 0.0
    %340 = vmatpush1.msra.mxu0 %v136
    %341 = vmatprep.subr.mxu0 0.0
    %342 = vmatpush1.msra.mxu0 %v137
    %343 = vmatprep.subr.mxu0 0.0
    %344 = vmatpush1.msra.mxu0 %v138
    %345 = vmatprep.subr.mxu0 0.0
    %346 = vmatpush1.msra.mxu0 %v139
    %347 = vmatprep.subr.mxu0 0.0
    %348 = vmatpush1.msra.mxu0 %v140
    %349 = vmatprep.subr.mxu0 0.0
    %350 = vmatpush1.msra.mxu0 %v141
    %351 = vmatprep.subr.mxu0 0.0
    %352 = vmatpush1.msra.mxu0 %v142
    %353 = vmatprep.subr.mxu0 0.0
    %354 = vmatpush1.msra.mxu0 %v143
    %355 = vmatprep.subr.mxu0 0.0
    %356 = vmatpush1.msra.mxu0 %v144
    %357 = vmatprep.subr.mxu0 0.0
    %358 = vmatpush1.msra.mxu0 %v145
    %359 = vmatprep.subr.mxu0 0.0
    %360 = vmatpush1.msra.mxu0 %v146
    %361 = vmatprep.subr.mxu0 0.0
    %362 = vmatpush1.msra.mxu0 %v147
    %363 = vmatprep.subr.mxu0 0.0
    %364 = vmatpush1.msra.mxu0 %v148
    %365 = vmatprep.subr.mxu0 0.0
    %366 = vmatpush1.msra.mxu0 %v149
    %367 = vmatprep.subr.mxu0 0.0
    %368 = vmatpush1.msra.mxu0 %v150
    %369 = vmatprep.subr.mxu0 0.0
    %370 = vmatpush1.msra.mxu0 %v151
    %371 = vmatprep.subr.mxu0 0.0
    %372 = vmatpush1.msra.mxu0 %v152
    %373 = vmatprep.mubr.f32.mxu0 %v55
    %374 = vmatmul.mubr.f32.gmra.mrb[0].mxu0 %v54
    %v375 = vpop.f32.mrb[0].mxu0
    %v376 = vadd.f32 %v306, %v375
    %v377 = vpop.f32.mrb[0].mxu0
    %378 = vdwg.mxu0
    %379 = vmatprep.subr.mxu0 0.0
    %380 = vmatpush1.msra.mxu0 %v153
    %381 = vmatprep.subr.mxu0 0.0
    %382 = vmatpush1.msra.mxu0 %v154
    %383 = vmatprep.subr.mxu0 0.0
    %384 = vmatpush1.msra.mxu0 %v155
    %385 = vmatprep.subr.mxu0 0.0
    %386 = vmatpush1.msra.mxu0 %v156
    %387 = vmatprep.subr.mxu0 0.0
    %388 = vmatpush1.msra.mxu0 %v157
    %389 = vmatprep.subr.mxu0 0.0
    %390 = vmatpush1.msra.mxu0 %v158
    %391 = vmatprep.subr.mxu0 0.0
    %392 = vmatpush1.msra.mxu0 %v159
    %393 = vmatprep.subr.mxu0 0.0
    %394 = vmatpush1.msra.mxu0 %v160
    %395 = vmatprep.subr.mxu0 0.0
    %396 = vmatpush1.msra.mxu0 %v161
    %397 = vmatprep.subr.mxu0 0.0
    %398 = vmatpush1.msra.mxu0 %v162
    %399 = vmatprep.subr.mxu0 0.0
    %400 = vmatpush1.msra.mxu0 %v163
    %401 = vmatprep.subr.mxu0 0.0
    %402 = vmatpush1.msra.mxu0 %v164
    %403 = vmatprep.subr.mxu0 0.0
    %404 = vmatpush1.msra.mxu0 %v165
    %405 = vmatprep.subr.mxu0 0.0
    %406 = vmatpush1.msra.mxu0 %v166
    %407 = vmatprep.subr.mxu0 0.0
    %408 = vmatpush1.msra.mxu0 %v167
    %409 = vmatprep.subr.mxu0 0.0
    %410 = vmatpush1.msra.mxu0 %v168
    %411 = vmatprep.subr.mxu0 0.0
    %412 = vmatpush1.msra.mxu0 0.0
    %413 = vmatprep.subr.mxu0 0.0
    %414 = vmatpush1.msra.mxu0 0.0
    %415 = vmatprep.subr.mxu0 0.0
    %416 = vmatpush1.msra.mxu0 0.0
    %417 = vmatprep.subr.mxu0 0.0
    %418 = vmatpush1.msra.mxu0 0.0
    %419 = vmatprep.subr.mxu0 0.0
    %420 = vmatpush1.msra.mxu0 0.0
    %421 = vmatprep.subr.mxu0 0.0
    %422 = vmatpush1.msra.mxu0 0.0
    %423 = vmatprep.subr.mxu0 0.0
    %424 = vmatpush1.msra.mxu0 0.0
    %425 = vmatprep.subr.mxu0 0.0
    %426 = vmatpush1.msra.mxu0 0.0
    %427 = vmatprep.subr.mxu0 0.0
    %428 = vmatpush1.msra.mxu0 0.0
    %429 = vmatprep.subr.mxu0 0.0
    %430 = vmatpush1.msra.mxu0 0.0
    %431 = vmatprep.subr.mxu0 0.0
    %432 = vmatpush1.msra.mxu0 0.0
    %433 = vmatprep.subr.mxu0 0.0
    %434 = vmatpush1.msra.mxu0 0.0
    %435 = vmatprep.subr.mxu0 0.0
    %436 = vmatpush1.msra.mxu0 0.0
    %437 = vmatprep.subr.mxu0 0.0
    %438 = vmatpush1.msra.mxu0 0.0
    %439 = vmatprep.subr.mxu0 0.0
    %440 = vmatpush1.msra.mxu0 0.0
    %441 = vmatprep.subr.mxu0 0.0
    %442 = vmatpush1.msra.mxu0 0.0
    %443 = vmatprep.mubr.f32.mxu0 0.0
    %444 = vmatmul.mubr.f32.gmra.mrb[0].mxu0 %v56
    %v445 = vpop.f32.mrb[0].mxu0
    %v446 = vadd.f32 %v376, %v445
    %v447 = vpop.f32.mrb[0].mxu0
    %448 = vdwg.mxu0
    %v449 = vrot.slane %v446, 4
    %v450 = vadd.f32 %v446, %v449
    %v451 = vrot.slane %v450, 2
    %v452 = vadd.f32 %v450, %v451
    %v453 = vrot.slane %v452, 1
    %v454 = vadd.f32 %v452, %v453
    %v455 = vmul.f32 %v454, 0.125
    %v456 = vsub.f32 %v446, %v455
    %v457 = vmul.f32 %v456, %v456
    %v458 = vrot.slane %v457, 4
    %v459 = vadd.f32 %v457, %v458
    %v460 = vrot.slane %v459, 2
    %v461 = vadd.f32 %v459, %v460
    %v462 = vrot.slane %v461, 1
    %v463 = vadd.f32 %v461, %v462
    %v464 = vmul.f32 %v463, 0.125
    %v465 = vadd.f32 %v464, 1e-05
    %v466 = vrsqrt.pop %v465
    %v467 = vld [vmem:[%s3] sm:$0x1]
    %v468 = vmul.f32 %v467, %v466
    %v470 = vlaneseq
    %v471 = vshrl.u32 %v470, 7
    %v472 = vsub.s32 0, %v471
    %v473 = vrot.slane %v468, %v472
    %v475 = vmul.f32 %v456, %v473
    %v476 = vld [vmem:[%s4] sm:$0x1]
    %v478 = vlaneseq
    %v479 = vshrl.u32 %v478, 7
    %v480 = vsub.s32 0, %v479
    %v481 = vrot.slane %v476, %v480
    %v483 = vadd.f32 %v475, %v481
    %v484 = vmax.f32 %v483, 0.0
    %v485 = vld [vmem:[%s5] sm:$0xff]
    %v486 = vld [vmem:[%s5 + $0x8] sm:$0xff]
    %v487 = vld [vmem:[%s5 + $0x10] sm:$0xff]
    %v488 = vld [vmem:[%s5 + $0x18] sm:$0xff]
    %v489 = vld [vmem:[%s5 + $0x20] sm:$0xff]
    %v490 = vld [vmem:[%s5 + $0x28] sm:$0xff]
    %v491 = vld [vmem:[%s5 + $0x30] sm:$0xff]
    %v492 = vld [vmem:[%s5 + $0x38] sm:$0xff]
    %v493 = vld [vmem:[%s5 + $0x40] sm:$0xff]
    %v494 = vld [vmem:[%s5 + $0x48] sm:$0xff]
    %v495 = vld [vmem:[%s5 + $0x50] sm:$0xff]
    %v496 = vld [vmem:[%s5 + $0x58] sm:$0xff]
    %v497 = vld [vmem:[%s5 + $0x60] sm:$0xff]
    %v498 = vld [vmem:[%s5 + $0x68] sm:$0xff]
    %v499 = vld [vmem:[%s5 + $0x70] sm:$0xff]
    %v500 = vld [vmem:[%s5 + $0x78] sm:$0xff]
    %v501 = vld [vmem:[%s6] sm:$0x1]
    %v503 = vlaneseq
    %v504 = vshrl.u32 %v503, 7
    %v505 = vsub.s32 0, %v504
    %v506 = vrot.slane %v501, %v505
    %508 = vmatprep.subr.mxu0 0.0
    %509 = vmatpush1.msra.mxu0 %v485
    %510 = vmatprep.subr.mxu0 0.0
    %511 = vmatpush1.msra.mxu0 %v486
    %512 = vmatprep.subr.mxu0 0.0
    %513 = vmatpush1.msra.mxu0 %v487
    %514 = vmatprep.subr.mxu0 0.0
    %515 = vmatpush1.msra.mxu0 %v488
    %516 = vmatprep.subr.mxu0 0.0
    %517 = vmatpush1.msra.mxu0 %v489
    %518 = vmatprep.subr.mxu0 0.0
    %519 = vmatpush1.msra.mxu0 %v490
    %520 = vmatprep.subr.mxu0 0.0
    %521 = vmatpush1.msra.mxu0 %v491
    %522 = vmatprep.subr.mxu0 0.0
    %523 = vmatpush1.msra.mxu0 %v492
    %524 = vmatprep.subr.mxu0 0.0
    %525 = vmatpush1.msra.mxu0 %v493
    %526 = vmatprep.subr.mxu0 0.0
    %527 = vmatpush1.msra.mxu0 %v494
    %528 = vmatprep.subr.mxu0 0.0
    %529 = vmatpush1.msra.mxu0 %v495
    %530 = vmatprep.subr.mxu0 0.0
    %531 = vmatpush1.msra.mxu0 %v496
    %532 = vmatprep.subr.mxu0 0.0
    %533 = vmatpush1.msra.mxu0 %v497
    %534 = vmatprep.subr.mxu0 0.0
    %535 = vmatpush1.msra.mxu0 %v498
    %536 = vmatprep.subr.mxu0 0.0
    %537 = vmatpush1.msra.mxu0 %v499
    %538 = vmatprep.subr.mxu0 0.0
    %539 = vmatpush1.msra.mxu0 %v500
    %540 = vmatprep.subr.mxu0 0.0
    %541 = vmatpush1.msra.mxu0 0.0
    %542 = vmatprep.subr.mxu0 0.0
    %543 = vmatpush1.msra.mxu0 0.0
    %544 = vmatprep.subr.mxu0 0.0
    %545 = vmatpush1.msra.mxu0 0.0
    %546 = vmatprep.subr.mxu0 0.0
    %547 = vmatpush1.msra.mxu0 0.0
    %548 = vmatprep.subr.mxu0 0.0
    %549 = vmatpush1.msra.mxu0 0.0
    %550 = vmatprep.subr.mxu0 0.0
    %551 = vmatpush1.msra.mxu0 0.0
    %552 = vmatprep.subr.mxu0 0.0
    %553 = vmatpush1.msra.mxu0 0.0
    %554 = vmatprep.subr.mxu0 0.0
    %555 = vmatpush1.msra.mxu0 0.0
    %556 = vmatprep.subr.mxu0 0.0
    %557 = vmatpush1.msra.mxu0 0.0
    %558 = vmatprep.subr.mxu0 0.0
    %559 = vmatpush1.msra.mxu0 0.0
    %560 = vmatprep.subr.mxu0 0.0
    %561 = vmatpush1.msra.mxu0 0.0
    %562 = vmatprep.subr.mxu0 0.0
    %563 = vmatpush1.msra.mxu0 0.0
    %564 = vmatprep.subr.mxu0 0.0
    %565 = vmatpush1.msra.mxu0 0.0
    %566 = vmatprep.subr.mxu0 0.0
    %567 = vmatpush1.msra.mxu0 0.0
    %568 = vmatprep.subr.mxu0 0.0
    %569 = vmatpush1.msra.mxu0 0.0
    %570 = vmatprep.subr.mxu0 0.0
    %571 = vmatpush1.msra.mxu0 0.0
    %572 = vmatprep.mubr.f32.mxu0 0.0
    %573 = vmatmul.mubr.f32.gmra.mrb[0].mxu0 %v484
    %v574 = vpop.f32.mrb[0].mxu0
    %v575 = vadd.f32 %v506, %v574
    %v576 = vpop.f32.mrb[0].mxu0
    %577 = vdwg.mxu0
    %578 = vst [vmem:[#allocation5] sm:$0xff] %v575
    %v579 = vld [vmem:[%s2] sm:$0x1]
    %v580 = vadd.f32 %v455, %v579
    %v581 = vld [vmem:[%s7] sm:$0x1]
    %v582 = vmul.f32 %v581, 0.1
    %v583 = vmul.f32 %v580, 0.9
    %v584 = vadd.f32 %v582, %v583
    %585 = vst [vmem:[%s10] sm:$0x1] %v584
    %v586 = vld [vmem:[%s8] sm:$0x1]
    %v587 = vmul.f32 %v586, 0.1
    %v588 = vmul.f32 %v464, 0.9
    %v589 = vadd.f32 %v587, %v588
    %590 = vst [vmem:[%s11] sm:$0x1] %v589
    // Predicated region
    $region42: #{multi_network_forward.1} parent=1 // pred_check
      _
    $region43: #{multi_network_forward.1} parent=1 // pred_check_branch
      %592 = sbr.rel (0) target = $region45
    $region44: #{multi_network_forward.1} parent=1 // pred_region
      %s594 = ssub.s32 128, 128
      %595 = vsyncadd [#allocation4], %s594
      %s597 = sshll.u32 [#allocation5], 4
      %s598 = int_to_ptr.vmem [resolvable:$true] %s597
      %600 = dma.vmem_to_hbm [thread:$0]  %s598, 128, %s9, [#allocation4]
    $region45: #{multi_network_forward.1} parent=1 // pred_fallthru
      _
    // Predicated region
    $region46: #{multi_network_forward.1} parent=1 // pred_check
      _
    $region47: #{multi_network_forward.1} parent=1 // pred_check_branch
      %602 = sbr.rel (0) target = $region49
    $region48: #{multi_network_forward.1} parent=1 // pred_region
      _
    $region49: #{multi_network_forward.1} parent=1 // pred_fallthru
      _
    // Predicated region
    $region50: #{multi_network_forward.1} parent=1 // pred_check
      _
    $region51: #{multi_network_forward.1} parent=1 // pred_check_branch
      %604 = sbr.rel (0) target = $region53
    $region52: #{multi_network_forward.1} parent=1 // pred_region
      _
    $region53: #{multi_network_forward.1} parent=1 // pred_fallthru
      _
    // Predicated region
    $region54: #{multi_network_forward.1} parent=1 // pred_check
      _
    $region55: #{multi_network_forward.1} parent=1 // pred_check_branch
      %606 = sbr.rel (0) target = $region57
    $region56: #{multi_network_forward.1} parent=1 // pred_region
      %607 = dma.done [#allocation4], 128
    $region57: #{multi_network_forward.1} parent=1 // pred_fallthru
      _
    // Predicated region
    $region58: #{multi_network_forward.1} parent=1 // pred_check
      _
    $region59: #{multi_network_forward.1} parent=1 // pred_check_branch
      %609 = sbr.rel (0) target = $region61
    $region60: #{multi_network_forward.1} parent=1 // pred_region
      _
    $region61: #{multi_network_forward.1} parent=1 // pred_fallthru
      _
    // Predicated region
    $region62: #{multi_network_forward.1} parent=1 // pred_check
      _
    $region63: #{multi_network_forward.1} parent=1 // pred_check_branch
      %611 = sbr.rel (0) target = $region65
    $region64: #{multi_network_forward.1} parent=1 // pred_region
      _
    $region65: #{multi_network_forward.1} parent=1 // pred_fallthru
      _
    %612 = vsyncpa [#allocation3], 1
    %613 = vsyncpa [#allocation4], 1

</llo_original>
